<compile_context>
chip_gen: v7x
topology: tpu7x:2x2x1
jax: 0.10.0
libtpu: 0.0.40
codegen_flags: <defaults>
</compile_context>

<pallas_src>
import math

import jax
import jax.numpy as jnp
from jax.experimental import pallas as pl
from jax.experimental.pallas import tpu as pltpu

_LANE = 1024                    # lane-dense width (multiple of 128) -> unmasked lane stores
_TARGET_BLOCK_BYTES = 4 << 20   # ~4 MiB per block: amortizes ~0.35 us/step, fits every gen
_VMEM_LIMIT_BYTES = 48 << 20    # explicit scoped-VMEM limit (< v7x's 64 MiB physical VMEM)
_SMALL_BYTES = 256 * 1024       # below this, plain XLA beats kernel launch + layout overhead


def _round_up(a: int, b: int) -> int:
    return -(-a // b) * b


def _hard_sigm_kernel(half_slope_ref, x_ref, o_ref):
    # half_slope_ref: (1, 1) f32 scalar in SMEM; x_ref / o_ref: (tile_rows, _LANE) in VMEM.
    half_slope = half_slope_ref[0, 0]
    t = half_slope * x_ref[...].astype(jnp.float32) + 0.5
    o_ref[...] = jnp.clip(t, 0.0, 1.0).astype(o_ref.dtype)


def hard_sigm2(x: jax.Array, slope) -> jax.Array:
    """HardSigm2 forward: clamp(0.5 * (slope * x + 1), 0, 1). Works for any shape/dtype."""
    orig_shape = x.shape
    orig_dtype = x.dtype
    total = math.prod(orig_shape) if orig_shape else 1
    itemsize = jnp.dtype(orig_dtype).itemsize

    # Fold the 0.5 factor into the scalar once (one VPU mul per element instead of two).
    half_slope = 0.5 * jnp.asarray(slope, dtype=jnp.float32)

    # Fast path: empty or tiny inputs — fixed kernel/pad overhead dominates; let XLA fuse it.
    if total == 0 or total * itemsize < _SMALL_BYTES:
        t = half_slope * x.astype(jnp.float32) + 0.5
        return jnp.clip(t, 0.0, 1.0).astype(orig_dtype)

    # Lane-dense 2D slab: (rows, _LANE). Pad only up to the next _LANE multiple; the last grid
    # block may overhang `rows` (reads of garbage are discarded, OOB stores are masked), so no
    # rounding of rows up to a tile multiple is needed.
    rows = -(-total // _LANE)
    padded_total = rows * _LANE

    # Dtype-aware tiling: keep block bytes ~constant; rows a multiple of the packed sublane.
    sublane = max(8, 32 // itemsize)                     # 8 f32 / 16 bf16 / 32 int8
    max_tile_rows = max(
        sublane, (_TARGET_BLOCK_BYTES // (_LANE * itemsize)) // sublane * sublane
    )
    # Cap tile size so the parallel grid has >= 2 steps (both v7x TensorCores get work).
    tile_rows = min(max_tile_rows, _round_up(-(-rows // 2), sublane))
    grid = (pl.cdiv(rows, tile_rows),)

    x_flat = x.reshape(-1)
    if padded_total != total:
        x_flat = jnp.pad(x_flat, (0, padded_total - total))
    x2d = x_flat.reshape(rows, _LANE)

    out2d = pl.pallas_call(
        _hard_sigm_kernel,
        out_shape=jax.ShapeDtypeStruct((rows, _LANE), orig_dtype),
        grid_spec=pltpu.PrefetchScalarGridSpec(
            num_scalar_prefetch=0,
            grid=grid,
            in_specs=[
                pl.BlockSpec(memory_space=pltpu.SMEM),               # (1,1) half_slope scalar
                pl.BlockSpec((tile_rows, _LANE), lambda i: (i, 0)),  # x tile
            ],
            out_specs=pl.BlockSpec((tile_rows, _LANE), lambda i: (i, 0)),
        ),
        compiler_params=pltpu.CompilerParams(
            dimension_semantics=("parallel",),
            vmem_limit_bytes=_VMEM_LIMIT_BYTES,
        ),
    )(half_slope.reshape(1, 1), x2d)

    out_flat = out2d.reshape(-1)
    if padded_total != total:
        out_flat = out_flat[:total]
    return out_flat.reshape(orig_shape)


if __name__ == "__main__":
    key = jax.random.PRNGKey(0)

    # Deterministic parameter init, matching nn.Parameter(torch.scalar_tensor(1.0)).
    slope = jnp.float32(1.0)

    def _ref(x):
        t = 0.5 * (jnp.float32(slope) * x.astype(jnp.float32) + 1.0)
        return jnp.clip(t, 0.0, 1.0).astype(x.dtype)

    k1, k2, k3, k4 = jax.random.split(key, 4)

    # 1) Primary small NCHW case (2048 elems = 8 KiB) -> XLA fast path.
    x1 = jax.random.normal(k1, (2, 4, 16, 16), dtype=jnp.float32) * 3.0
    out1 = jax.block_until_ready(hard_sigm2(x1, slope))
    assert out1.shape == x1.shape
    assert jnp.allclose(out1, _ref(x1), atol=1e-6), "mismatch vs reference (case 1)"

    # 2) Ragged medium case (~364 KiB) -> Pallas path: minimal lane pad + overhanging last block.
    x2 = jax.random.normal(k2, (7, 13, 33, 31), dtype=jnp.float32) * 2.0
    out2 = jax.block_until_ready(hard_sigm2(x2, slope))
    assert out2.shape == x2.shape
    assert jnp.allclose(out2, _ref(x2), atol=1e-6), "mismatch vs reference (case 2)"

    # 3) Larger case (4 MiB, no pad) -> Pallas path, grid >= 2 so both v7x TCs are used.
    x3 = jax.random.normal(k3, (16, 16, 64, 64), dtype=jnp.float32) * 3.0
    out3 = jax.block_until_ready(hard_sigm2(x3, slope))
    assert out3.shape == x3.shape
    assert jnp.allclose(out3, _ref(x3), atol=1e-6), "mismatch vs reference (case 3)"

    # 4) bf16 case -> exercises dtype-aware tiling (16-row sublane packing, larger tile_rows).
    x4 = (jax.random.normal(k4, (8, 8, 64, 64), dtype=jnp.float32) * 3.0).astype(jnp.bfloat16)
    out4 = jax.block_until_ready(hard_sigm2(x4, slope))
    assert out4.shape == x4.shape
    assert jnp.allclose(out4.astype(jnp.float32), _ref(x4).astype(jnp.float32),
                        atol=1e-2), "mismatch vs reference (case 4)"

    print("KERNEL_OK")
</pallas_src>

<mosaic_0001>
module attributes {stable_mosaic.version = 11 : i64} {
  func.func @_hard_sigm_kernel(%arg0: i32, %arg1: memref<1x1xf32, #tpu.memory_space<smem>>, %arg2: memref<48x1024xf32, #tpu.memory_space<vmem>>, %arg3: memref<48x1024xf32, #tpu.memory_space<vmem>>) attributes {dimension_semantics = [#tpu.dimension_semantics<parallel>], iteration_bounds = array<i64: 2>, scalar_prefetch = 0 : i64, scratch_operands = 0 : i64, tpu.core_type = #tpu.core_type<tc>, window_params = [{transform_indices = @transform_0, window_bounds = array<i64: 1, 1>}, {transform_indices = @transform_1, window_bounds = array<i64: 48, 1024>}, {transform_indices = @transform_2, window_bounds = array<i64: 48, 1024>}]} {
    %c0 = arith.constant 0 : index
    %c0_0 = arith.constant 0 : index
    %0 = memref.load %arg1[%c0, %c0_0] : memref<1x1xf32, #tpu.memory_space<smem>>
    %c0_1 = arith.constant 0 : index
    %c0_2 = arith.constant 0 : index
    %1 = vector.load %arg2[%c0_1, %c0_2] : memref<48x1024xf32, #tpu.memory_space<vmem>>, vector<48x1024xf32>
    %2 = vector.broadcast %0 : f32 to vector<48x1024xf32>
    %3 = arith.mulf %2, %1 : vector<48x1024xf32>
    %cst = arith.constant 5.000000e-01 : f32
    %4 = vector.broadcast %cst : f32 to vector<48x1024xf32>
    %5 = arith.addf %3, %4 : vector<48x1024xf32>
    %cst_3 = arith.constant 0.000000e+00 : f32
    %cst_4 = arith.constant 1.000000e+00 : f32
    %6 = vector.broadcast %cst_3 : f32 to vector<48x1024xf32>
    %7 = arith.maximumf %6, %5 : vector<48x1024xf32>
    %8 = vector.broadcast %cst_4 : f32 to vector<48x1024xf32>
    %9 = arith.minimumf %8, %7 : vector<48x1024xf32>
    %c0_5 = arith.constant 0 : index
    %c0_6 = arith.constant 0 : index
    %10 = vector.load %arg3[%c0_5, %c0_6] : memref<48x1024xf32, #tpu.memory_space<vmem>>, vector<48x1024xf32>
    tpu.vector_store %arg3[%c0_5, %c0_6], %9 {strides = array<i32>} : memref<48x1024xf32, #tpu.memory_space<vmem>>, vector<48x1024xf32>,
    return
  }
  func.func @transform_0(%arg0: i32) -> (i32, i32) {
    %c0_i32 = arith.constant 0 : i32
    %c0_i32_0 = arith.constant 0 : i32
    %c0_i32_1 = arith.constant 0 : i32
    return %c0_i32, %c0_i32_0 : i32, i32
  }
  func.func @transform_1(%arg0: i32) -> (i32, i32) {
    %c0_i32 = arith.constant 0 : i32
    %c0_i32_0 = arith.constant 0 : i32
    return %arg0, %c0_i32 : i32, i32
  }
  func.func @transform_2(%arg0: i32) -> (i32, i32) {
    %c0_i32 = arith.constant 0 : i32
    %c0_i32_0 = arith.constant 0 : i32
    return %arg0, %c0_i32 : i32, i32
  }
}

</mosaic_0001>

<llo_original>
// kernel: tpu_custom_call.1
$region0: #{tpu_custom_call.1}
  #allocation0 [shape = 'u32[]', space=smem, size = 0x4, offset = 0x4, fixed_abs, tag = 'smem constant byte address 0x4 - core index']
  #allocation1 [shape = 'u32[144,128]{1,0:T(1,128)}', space=vmem, size = 0x12000, scoped, tag = 'internal scratch']
  #allocation2 [shape = 'f32[1,1]{1,0:T(1,128)S(6)}', space=smem, size = 0x200, scoped, tag = 'scoped memory for tpu_custom_call.1']
  %s0 = inlined_call_operand.<no memory space> [shape: f32[1,1], index: 0, kind: input, shape index: {}]
  %s1 = inlined_call_operand.hbm [shape: f32[91,1024], index: 1, kind: input, shape index: {}]
  %s2 = inlined_call_operand.hbm [shape: f32[91,1024], index: 2, kind: output, shape index: {}]
  %s3 = sld [smem:[#allocation0]]
  $region45: #{tpu_custom_call.1} parent=0
    _
  %s5 = ssub.s32 1, %s3
  %s6 = scalar_select 0, %s5, %s3
  %7 = sst [smem:[#allocation2]] %s0
  $region1: #{tpu_custom_call.1} parent=0
    #allocation3 [shape = 'u8[393216]{0}', space=vmem, size = 0x60000, scoped, tag = 'input window, operand 1']
    #allocation4 [shape = 's32[2]{0}', space=sflag, size = 0x8, scoped, tag = 'scoped memory for tpu_custom_call.1']
    #allocation5 [shape = 's32[2]{0}', space=sflag, size = 0x8, scoped, tag = 'scoped memory for tpu_custom_call.1']
    #allocation6 [shape = 'u8[393216]{0}', space=vmem, size = 0x60000, scoped, tag = 'output window, operand 0']
    %8 = vsyncpa [#allocation4], 0
    %s9 = scalar_lea.sflag [#allocation4], 1
    %10 = vsyncpa %s9, 0
    %11 = vsyncpa [#allocation5], 0
    %s12 = scalar_lea.sflag [#allocation5], 1
    %13 = vsyncpa %s12, 0
    loop: start=0, step=1, limit=4
    $region2: #{tpu_custom_call.1} parent=1 // loop_pre_header
      _
    $region3: #{tpu_custom_call.1} parent=1 // loop_header
      %s15 = sphi 0, %s19
      %p16 = scmp.ge.s32.totalorder %s15, 4
      %s23 = sphi 0, %s23
      %s25 = sphi 0, %s23
      %s26 = sphi 0, %s25
      %s40 = sphi 0, %s26
      %s46 = sphi 0, %s48
      %s49 = sphi 0, %s46
      %s50 = sphi 0, %s49
      %s66 = sphi 0, %s50
      %s72 = sphi 0, %s74
      %s75 = sphi 0, %s72
      %s76 = sphi 0, %s75
      %s92 = sphi 0, %s76
    $region4: #{tpu_custom_call.1} parent=1 // loop_header_branch
      %18 = sbr.rel (%p16) target = $region8
    $region5: #{tpu_custom_call.1} parent=1 // loop_body
      %s20 = ssub.s32 %s15, 1
      %s21 = ssub.s32 %s15, 2
      %s22 = sadd.s32 %s15, 1
      %s24 = sadd.s32 %s23, 1
      %p27 = scmp.eq.s32.totalorder %s15, 1
      %p28 = scmp.ne.s32.totalorder %s23, %s25
      %p29 = scmp.eq.s32.totalorder %s15, 0
      %p30 = por %p28, %p29
      %p31 = scmp.ne.s32.totalorder %s23, %s25
      %p32 = scmp.eq.s32.totalorder %s20, 1
      %p33 = por %p31, %p32
      %p34 = scmp.ne.s32.totalorder %s25, %s26
      %p35 = scmp.eq.s32.totalorder %s20, 0
      %p36 = por %p34, %p35
      %p37 = scmp.ne.s32.totalorder %s25, %s26
      %p38 = scmp.eq.s32.totalorder %s21, 1
      %p39 = por %p37, %p38
      %p41 = scmp.ne.s32.totalorder %s26, %s40
      %p42 = scmp.eq.s32.totalorder %s21, 0
      %p43 = por %p41, %p42
      %s44 = ssub.s32 %s15, %s22
      %p45 = scmp.eq.s32.totalorder %s44, 0
      %s47 = sadd.s32 %s46, 1
      %s48 = scalar_select %p45, %s46, %s47
      %p51 = pneg %p45
      %p52 = scmp.eq.s32.totalorder %s15, 1
      %p53 = por %p51, %p52
      %p54 = scmp.ne.s32.totalorder %s46, %s49
      %p55 = scmp.eq.s32.totalorder %s15, 0
      %p56 = por %p54, %p55
      %p57 = scmp.ne.s32.totalorder %s46, %s49
      %p58 = scmp.eq.s32.totalorder %s20, 1
      %p59 = por %p57, %p58
      %p60 = scmp.ne.s32.totalorder %s49, %s50
      %p61 = scmp.eq.s32.totalorder %s20, 0
      %p62 = por %p60, %p61
      %p63 = scmp.ne.s32.totalorder %s49, %s50
      %p64 = scmp.eq.s32.totalorder %s21, 1
      %p65 = por %p63, %p64
      %p67 = scmp.ne.s32.totalorder %s50, %s66
      %p68 = scmp.eq.s32.totalorder %s21, 0
      %p69 = por %p67, %p68
      %s70 = ssub.s32 %s15, %s22
      %p71 = scmp.eq.s32.totalorder %s70, 0
      %s73 = sadd.s32 %s72, 1
      %s74 = scalar_select %p71, %s72, %s73
      %p77 = pneg %p71
      %p78 = scmp.eq.s32.totalorder %s15, 1
      %p79 = por %p77, %p78
      %p80 = scmp.ne.s32.totalorder %s72, %s75
      %p81 = scmp.eq.s32.totalorder %s15, 0
      %p82 = por %p80, %p81
      %p83 = scmp.ne.s32.totalorder %s72, %s75
      %p84 = scmp.eq.s32.totalorder %s20, 1
      %p85 = por %p83, %p84
      %p86 = scmp.ne.s32.totalorder %s75, %s76
      %p87 = scmp.eq.s32.totalorder %s20, 0
      %p88 = por %p86, %p87
      %p89 = scmp.ne.s32.totalorder %s75, %s76
      %p90 = scmp.eq.s32.totalorder %s21, 1
      %p91 = por %p89, %p90
      %p93 = scmp.ne.s32.totalorder %s76, %s92
      %p94 = scmp.eq.s32.totalorder %s21, 0
      %p95 = por %p93, %p94
      %p96 = scmp.le.s32.totalorder 1, %s15
      %p97 = scmp.lt.s32.totalorder %s15, 3
      %p98 = pnand %p96, %p97
      %p99 = pneg %p98
      // Predicated region
      $region9: #{tpu_custom_call.1} parent=5 // pred_check
        _
      $region10: #{tpu_custom_call.1} parent=5 // pred_check_branch
        %101 = sbr.rel (%p98) target = $region12
      $region11: #{tpu_custom_call.1} parent=5 // pred_region
        %s102 = ssub.s32 %s15, 1
        // Predicated region
        $region13: #{tpu_custom_call.1} parent=11 // pred_check
          %p103 = pneg %p36
        $region14: #{tpu_custom_call.1} parent=11 // pred_check_branch
          %105 = sbr.rel (%p103) target = $region16
        $region15: #{tpu_custom_call.1} parent=11 // pred_region
          _
        $region16: #{tpu_custom_call.1} parent=11 // pred_fallthru
          _
      $region12: #{tpu_custom_call.1} parent=5 // pred_fallthru
        _
      %p106 = scmp.lt.s32.totalorder %s15, 2
      // Predicated region
      $region17: #{tpu_custom_call.1} parent=5 // pred_check
        %p107 = pneg %p106
      $region18: #{tpu_custom_call.1} parent=5 // pred_check_branch
        %109 = sbr.rel (%p107) target = $region20
      $region19: #{tpu_custom_call.1} parent=5 // pred_region
        // Predicated region
        $region21: #{tpu_custom_call.1} parent=19 // pred_check
          %p110 = pneg %p56
        $region22: #{tpu_custom_call.1} parent=19 // pred_check_branch
          %112 = sbr.rel (%p110) target = $region24
        $region23: #{tpu_custom_call.1} parent=19 // pred_region
          %s113 = sand.u32 %s46, 1
          %s114 = scalar_lea.sflag [#allocation4], %s113
          %s115 = sand.u32 %s46, 1
          %s116 = smul.addr %s115, 384
          %s117 = scalar_lea.vmem [#allocation3], %s116
          %s118 = smul.u32 6, %s15
          %s120 = ssub.s32 6144, 6144
          %121 = vsyncadd %s114, %s120
          %s122 = smul.addr %s118, 8
          %s123 = smul.addr %s122, 128
          %s124 = scalar_lea.hbm %s1, %s123
          %s125 = sshll.u32 %s117, 4
          %s126 = int_to_ptr.vmem [resolvable:$true] %s125
          %131 = dma.hbm_to_vmem [thread:$0]  %s124, 6144, %s126, %s114, 1024, 1024, 64
        $region24: #{tpu_custom_call.1} parent=19 // pred_fallthru
          _
      $region20: #{tpu_custom_call.1} parent=5 // pred_fallthru
        _
      %p132 = scmp.le.s32.totalorder 1, %s15
      %p133 = scmp.lt.s32.totalorder %s15, 3
      %p134 = pnand %p132, %p133
      %p135 = pneg %p134
      // Predicated region
      $region25: #{tpu_custom_call.1} parent=5 // pred_check
        _
      $region26: #{tpu_custom_call.1} parent=5 // pred_check_branch
        %137 = sbr.rel (%p134) target = $region28
      $region27: #{tpu_custom_call.1} parent=5 // pred_region
        %s138 = ssub.s32 %s15, 1
        %s139 = sand.u32 %s49, 1
        %s140 = scalar_lea.sflag [#allocation4], %s139
        %s141 = sand.u32 %s49, 1
        %s142 = smul.addr %s141, 384
        %s143 = scalar_lea.vmem [#allocation3], %s142
        // Predicated region
        $region29: #{tpu_custom_call.1} parent=27 // pred_check
          %p144 = pneg %p62
        $region30: #{tpu_custom_call.1} parent=27 // pred_check_branch
          %146 = sbr.rel (%p144) target = $region32
        $region31: #{tpu_custom_call.1} parent=27 // pred_region
          %147 = dma.done %s140, 6144
        $region32: #{tpu_custom_call.1} parent=27 // pred_fallthru
          _
        %p148 = pneg %p36
        %p149 = pneg %p33
        %s150 = sand.u32 %s49, 1
        %s151 = scalar_lea.sflag [#allocation4], %s150
        %s152 = sand.u32 %s49, 1
        %s153 = smul.addr %s152, 384
        %s154 = scalar_lea.vmem [#allocation3], %s153
        %p155 = pneg %p62
        %p156 = pneg %p59
        %p157 = pneg %p88
        %p158 = pneg %p85
        %s159 = sand.u32 %s75, 1
        %s160 = scalar_lea.sflag [#allocation5], %s159
        %s161 = sand.u32 %s75, 1
        %s162 = smul.addr %s161, 384
        %s163 = scalar_lea.vmem [#allocation6], %s162
        %s164 = smul.u32 6, %s20
        %s165 = smul.u32 6, %s20
        %s166 = sld [smem:[#allocation2]]
        %v167 = vld [vmem:[%s143] sm:$0xff]
        %v168 = vld [vmem:[%s143 + $0x8] sm:$0xff]
        %v169 = vld [vmem:[%s143 + $0x10] sm:$0xff]
        %v170 = vld [vmem:[%s143 + $0x18] sm:$0xff]
        %v171 = vld [vmem:[%s143 + $0x20] sm:$0xff]
        %v172 = vld [vmem:[%s143 + $0x28] sm:$0xff]
        %v173 = vld [vmem:[%s143 + $0x30] sm:$0xff]
        %v174 = vld [vmem:[%s143 + $0x38] sm:$0xff]
        %v175 = vld [vmem:[%s143 + $0x40] sm:$0xff]
        %v176 = vld [vmem:[%s143 + $0x48] sm:$0xff]
        %v177 = vld [vmem:[%s143 + $0x50] sm:$0xff]
        %v178 = vld [vmem:[%s143 + $0x58] sm:$0xff]
        %v179 = vld [vmem:[%s143 + $0x60] sm:$0xff]
        %v180 = vld [vmem:[%s143 + $0x68] sm:$0xff]
        %v181 = vld [vmem:[%s143 + $0x70] sm:$0xff]
        %v182 = vld [vmem:[%s143 + $0x78] sm:$0xff]
        %v183 = vld [vmem:[%s143 + $0x80] sm:$0xff]
        %v184 = vld [vmem:[%s143 + $0x88] sm:$0xff]
        %v185 = vld [vmem:[%s143 + $0x90] sm:$0xff]
        %v186 = vld [vmem:[%s143 + $0x98] sm:$0xff]
        %v187 = vld [vmem:[%s143 + $0xa0] sm:$0xff]
        %v188 = vld [vmem:[%s143 + $0xa8] sm:$0xff]
        %v189 = vld [vmem:[%s143 + $0xb0] sm:$0xff]
        %v190 = vld [vmem:[%s143 + $0xb8] sm:$0xff]
        %v191 = vld [vmem:[%s143 + $0xc0] sm:$0xff]
        %v192 = vld [vmem:[%s143 + $0xc8] sm:$0xff]
        %v193 = vld [vmem:[%s143 + $0xd0] sm:$0xff]
        %v194 = vld [vmem:[%s143 + $0xd8] sm:$0xff]
        %v195 = vld [vmem:[%s143 + $0xe0] sm:$0xff]
        %v196 = vld [vmem:[%s143 + $0xe8] sm:$0xff]
        %v197 = vld [vmem:[%s143 + $0xf0] sm:$0xff]
        %v198 = vld [vmem:[%s143 + $0xf8] sm:$0xff]
        %v199 = vld [vmem:[%s143 + $0x100] sm:$0xff]
        %v200 = vld [vmem:[%s143 + $0x108] sm:$0xff]
        %v201 = vld [vmem:[%s143 + $0x110] sm:$0xff]
        %v202 = vld [vmem:[%s143 + $0x118] sm:$0xff]
        %v203 = vld [vmem:[%s143 + $0x120] sm:$0xff]
        %v204 = vld [vmem:[%s143 + $0x128] sm:$0xff]
        %v205 = vld [vmem:[%s143 + $0x130] sm:$0xff]
        %v206 = vld [vmem:[%s143 + $0x138] sm:$0xff]
        %v207 = vld [vmem:[%s143 + $0x140] sm:$0xff]
        %v208 = vld [vmem:[%s143 + $0x148] sm:$0xff]
        %v209 = vld [vmem:[%s143 + $0x150] sm:$0xff]
        %v210 = vld [vmem:[%s143 + $0x158] sm:$0xff]
        %v211 = vld [vmem:[%s143 + $0x160] sm:$0xff]
        %v212 = vld [vmem:[%s143 + $0x168] sm:$0xff]
        %v213 = vld [vmem:[%s143 + $0x170] sm:$0xff]
        %v214 = vld [vmem:[%s143 + $0x178] sm:$0xff]
        %v215 = vstv %s166
        %v216 = vmul.f32 %v215, %v167
        %v217 = vmul.f32 %v215, %v168
        %v218 = vmul.f32 %v215, %v169
        %v219 = vmul.f32 %v215, %v170
        %v220 = vmul.f32 %v215, %v171
        %v221 = vmul.f32 %v215, %v172
        %v222 = vmul.f32 %v215, %v173
        %v223 = vmul.f32 %v215, %v174
        %v224 = vmul.f32 %v215, %v175
        %v225 = vmul.f32 %v215, %v176
        %v226 = vmul.f32 %v215, %v177
        %v227 = vmul.f32 %v215, %v178
        %v228 = vmul.f32 %v215, %v179
        %v229 = vmul.f32 %v215, %v180
        %v230 = vmul.f32 %v215, %v181
        %v231 = vmul.f32 %v215, %v182
        %v232 = vmul.f32 %v215, %v183
        %v233 = vmul.f32 %v215, %v184
        %v234 = vmul.f32 %v215, %v185
        %v235 = vmul.f32 %v215, %v186
        %v236 = vmul.f32 %v215, %v187
        %v237 = vmul.f32 %v215, %v188
        %v238 = vmul.f32 %v215, %v189
        %v239 = vmul.f32 %v215, %v190
        %v240 = vmul.f32 %v215, %v191
        %v241 = vmul.f32 %v215, %v192
        %v242 = vmul.f32 %v215, %v193
        %v243 = vmul.f32 %v215, %v194
        %v244 = vmul.f32 %v215, %v195
        %v245 = vmul.f32 %v215, %v196
        %v246 = vmul.f32 %v215, %v197
        %v247 = vmul.f32 %v215, %v198
        %v248 = vmul.f32 %v215, %v199
        %v249 = vmul.f32 %v215, %v200
        %v250 = vmul.f32 %v215, %v201
        %v251 = vmul.f32 %v215, %v202
        %v252 = vmul.f32 %v215, %v203
        %v253 = vmul.f32 %v215, %v204
        %v254 = vmul.f32 %v215, %v205
        %v255 = vmul.f32 %v215, %v206
        %v256 = vmul.f32 %v215, %v207
        %v257 = vmul.f32 %v215, %v208
        %v258 = vmul.f32 %v215, %v209
        %v259 = vmul.f32 %v215, %v210
        %v260 = vmul.f32 %v215, %v211
        %v261 = vmul.f32 %v215, %v212
        %v262 = vmul.f32 %v215, %v213
        %v263 = vmul.f32 %v215, %v214
        %v264 = vadd.f32 %v216, 0.5
        %v265 = vadd.f32 %v217, 0.5
        %v266 = vadd.f32 %v218, 0.5
        %v267 = vadd.f32 %v219, 0.5
        %v268 = vadd.f32 %v220, 0.5
        %v269 = vadd.f32 %v221, 0.5
        %v270 = vadd.f32 %v222, 0.5
        %v271 = vadd.f32 %v223, 0.5
        %v272 = vadd.f32 %v224, 0.5
        %v273 = vadd.f32 %v225, 0.5
        %v274 = vadd.f32 %v226, 0.5
        %v275 = vadd.f32 %v227, 0.5
        %v276 = vadd.f32 %v228, 0.5
        %v277 = vadd.f32 %v229, 0.5
        %v278 = vadd.f32 %v230, 0.5
        %v279 = vadd.f32 %v231, 0.5
        %v280 = vadd.f32 %v232, 0.5
        %v281 = vadd.f32 %v233, 0.5
        %v282 = vadd.f32 %v234, 0.5
        %v283 = vadd.f32 %v235, 0.5
        %v284 = vadd.f32 %v236, 0.5
        %v285 = vadd.f32 %v237, 0.5
        %v286 = vadd.f32 %v238, 0.5
        %v287 = vadd.f32 %v239, 0.5
        %v288 = vadd.f32 %v240, 0.5
        %v289 = vadd.f32 %v241, 0.5
        %v290 = vadd.f32 %v242, 0.5
        %v291 = vadd.f32 %v243, 0.5
        %v292 = vadd.f32 %v244, 0.5
        %v293 = vadd.f32 %v245, 0.5
        %v294 = vadd.f32 %v246, 0.5
        %v295 = vadd.f32 %v247, 0.5
        %v296 = vadd.f32 %v248, 0.5
        %v297 = vadd.f32 %v249, 0.5
        %v298 = vadd.f32 %v250, 0.5
        %v299 = vadd.f32 %v251, 0.5
        %v300 = vadd.f32 %v252, 0.5
        %v301 = vadd.f32 %v253, 0.5
        %v302 = vadd.f32 %v254, 0.5
        %v303 = vadd.f32 %v255, 0.5
        %v304 = vadd.f32 %v256, 0.5
        %v305 = vadd.f32 %v257, 0.5
        %v306 = vadd.f32 %v258, 0.5
        %v307 = vadd.f32 %v259, 0.5
        %v308 = vadd.f32 %v260, 0.5
        %v309 = vadd.f32 %v261, 0.5
        %v310 = vadd.f32 %v262, 0.5
        %v311 = vadd.f32 %v263, 0.5
        %v312 = vmax.f32 %v264, 0.0
        %v313 = vmax.f32 %v265, 0.0
        %v314 = vmax.f32 %v266, 0.0
        %v315 = vmax.f32 %v267, 0.0
        %v316 = vmax.f32 %v268, 0.0
        %v317 = vmax.f32 %v269, 0.0
        %v318 = vmax.f32 %v270, 0.0
        %v319 = vmax.f32 %v271, 0.0
        %v320 = vmax.f32 %v272, 0.0
        %v321 = vmax.f32 %v273, 0.0
        %v322 = vmax.f32 %v274, 0.0
        %v323 = vmax.f32 %v275, 0.0
        %v324 = vmax.f32 %v276, 0.0
        %v325 = vmax.f32 %v277, 0.0
        %v326 = vmax.f32 %v278, 0.0
        %v327 = vmax.f32 %v279, 0.0
        %v328 = vmax.f32 %v280, 0.0
        %v329 = vmax.f32 %v281, 0.0
        %v330 = vmax.f32 %v282, 0.0
        %v331 = vmax.f32 %v283, 0.0
        %v332 = vmax.f32 %v284, 0.0
        %v333 = vmax.f32 %v285, 0.0
        %v334 = vmax.f32 %v286, 0.0
        %v335 = vmax.f32 %v287, 0.0
        %v336 = vmax.f32 %v288, 0.0
        %v337 = vmax.f32 %v289, 0.0
        %v338 = vmax.f32 %v290, 0.0
        %v339 = vmax.f32 %v291, 0.0
        %v340 = vmax.f32 %v292, 0.0
        %v341 = vmax.f32 %v293, 0.0
        %v342 = vmax.f32 %v294, 0.0
        %v343 = vmax.f32 %v295, 0.0
        %v344 = vmax.f32 %v296, 0.0
        %v345 = vmax.f32 %v297, 0.0
        %v346 = vmax.f32 %v298, 0.0
        %v347 = vmax.f32 %v299, 0.0
        %v348 = vmax.f32 %v300, 0.0
        %v349 = vmax.f32 %v301, 0.0
        %v350 = vmax.f32 %v302, 0.0
        %v351 = vmax.f32 %v303, 0.0
        %v352 = vmax.f32 %v304, 0.0
        %v353 = vmax.f32 %v305, 0.0
        %v354 = vmax.f32 %v306, 0.0
        %v355 = vmax.f32 %v307, 0.0
        %v356 = vmax.f32 %v308, 0.0
        %v357 = vmax.f32 %v309, 0.0
        %v358 = vmax.f32 %v310, 0.0
        %v359 = vmax.f32 %v311, 0.0
        %v360 = vmin.f32 %v312, 1.0
        %v361 = vmin.f32 %v313, 1.0
        %v362 = vmin.f32 %v314, 1.0
        %v363 = vmin.f32 %v315, 1.0
        %v364 = vmin.f32 %v316, 1.0
        %v365 = vmin.f32 %v317, 1.0
        %v366 = vmin.f32 %v318, 1.0
        %v367 = vmin.f32 %v319, 1.0
        %v368 = vmin.f32 %v320, 1.0
        %v369 = vmin.f32 %v321, 1.0
        %v370 = vmin.f32 %v322, 1.0
        %v371 = vmin.f32 %v323, 1.0
        %v372 = vmin.f32 %v324, 1.0
        %v373 = vmin.f32 %v325, 1.0
        %v374 = vmin.f32 %v326, 1.0
        %v375 = vmin.f32 %v327, 1.0
        %v376 = vmin.f32 %v328, 1.0
        %v377 = vmin.f32 %v329, 1.0
        %v378 = vmin.f32 %v330, 1.0
        %v379 = vmin.f32 %v331, 1.0
        %v380 = vmin.f32 %v332, 1.0
        %v381 = vmin.f32 %v333, 1.0
        %v382 = vmin.f32 %v334, 1.0
        %v383 = vmin.f32 %v335, 1.0
        %v384 = vmin.f32 %v336, 1.0
        %v385 = vmin.f32 %v337, 1.0
        %v386 = vmin.f32 %v338, 1.0
        %v387 = vmin.f32 %v339, 1.0
        %v388 = vmin.f32 %v340, 1.0
        %v389 = vmin.f32 %v341, 1.0
        %v390 = vmin.f32 %v342, 1.0
        %v391 = vmin.f32 %v343, 1.0
        %v392 = vmin.f32 %v344, 1.0
        %v393 = vmin.f32 %v345, 1.0
        %v394 = vmin.f32 %v346, 1.0
        %v395 = vmin.f32 %v347, 1.0
        %v396 = vmin.f32 %v348, 1.0
        %v397 = vmin.f32 %v349, 1.0
        %v398 = vmin.f32 %v350, 1.0
        %v399 = vmin.f32 %v351, 1.0
        %v400 = vmin.f32 %v352, 1.0
        %v401 = vmin.f32 %v353, 1.0
        %v402 = vmin.f32 %v354, 1.0
        %v403 = vmin.f32 %v355, 1.0
        %v404 = vmin.f32 %v356, 1.0
        %v405 = vmin.f32 %v357, 1.0
        %v406 = vmin.f32 %v358, 1.0
        %v407 = vmin.f32 %v359, 1.0
        %408 = vst [vmem:[%s163] sm:$0xff] %v360
        %409 = vst [vmem:[%s163 + $0x8] sm:$0xff] %v361
        %410 = vst [vmem:[%s163 + $0x10] sm:$0xff] %v362
        %411 = vst [vmem:[%s163 + $0x18] sm:$0xff] %v363
        %412 = vst [vmem:[%s163 + $0x20] sm:$0xff] %v364
        %413 = vst [vmem:[%s163 + $0x28] sm:$0xff] %v365
        %414 = vst [vmem:[%s163 + $0x30] sm:$0xff] %v366
        %415 = vst [vmem:[%s163 + $0x38] sm:$0xff] %v367
        %416 = vst [vmem:[%s163 + $0x40] sm:$0xff] %v368
        %417 = vst [vmem:[%s163 + $0x48] sm:$0xff] %v369
        %418 = vst [vmem:[%s163 + $0x50] sm:$0xff] %v370
        %419 = vst [vmem:[%s163 + $0x58] sm:$0xff] %v371
        %420 = vst [vmem:[%s163 + $0x60] sm:$0xff] %v372
        %421 = vst [vmem:[%s163 + $0x68] sm:$0xff] %v373
        %422 = vst [vmem:[%s163 + $0x70] sm:$0xff] %v374
        %423 = vst [vmem:[%s163 + $0x78] sm:$0xff] %v375
        %424 = vst [vmem:[%s163 + $0x80] sm:$0xff] %v376
        %425 = vst [vmem:[%s163 + $0x88] sm:$0xff] %v377
        %426 = vst [vmem:[%s163 + $0x90] sm:$0xff] %v378
        %427 = vst [vmem:[%s163 + $0x98] sm:$0xff] %v379
        %428 = vst [vmem:[%s163 + $0xa0] sm:$0xff] %v380
        %429 = vst [vmem:[%s163 + $0xa8] sm:$0xff] %v381
        %430 = vst [vmem:[%s163 + $0xb0] sm:$0xff] %v382
        %431 = vst [vmem:[%s163 + $0xb8] sm:$0xff] %v383
        %432 = vst [vmem:[%s163 + $0xc0] sm:$0xff] %v384
        %433 = vst [vmem:[%s163 + $0xc8] sm:$0xff] %v385
        %434 = vst [vmem:[%s163 + $0xd0] sm:$0xff] %v386
        %435 = vst [vmem:[%s163 + $0xd8] sm:$0xff] %v387
        %436 = vst [vmem:[%s163 + $0xe0] sm:$0xff] %v388
        %437 = vst [vmem:[%s163 + $0xe8] sm:$0xff] %v389
        %438 = vst [vmem:[%s163 + $0xf0] sm:$0xff] %v390
        %439 = vst [vmem:[%s163 + $0xf8] sm:$0xff] %v391
        %440 = vst [vmem:[%s163 + $0x100] sm:$0xff] %v392
        %441 = vst [vmem:[%s163 + $0x108] sm:$0xff] %v393
        %442 = vst [vmem:[%s163 + $0x110] sm:$0xff] %v394
        %443 = vst [vmem:[%s163 + $0x118] sm:$0xff] %v395
        %444 = vst [vmem:[%s163 + $0x120] sm:$0xff] %v396
        %445 = vst [vmem:[%s163 + $0x128] sm:$0xff] %v397
        %446 = vst [vmem:[%s163 + $0x130] sm:$0xff] %v398
        %447 = vst [vmem:[%s163 + $0x138] sm:$0xff] %v399
        %448 = vst [vmem:[%s163 + $0x140] sm:$0xff] %v400
        %449 = vst [vmem:[%s163 + $0x148] sm:$0xff] %v401
        %450 = vst [vmem:[%s163 + $0x150] sm:$0xff] %v402
        %451 = vst [vmem:[%s163 + $0x158] sm:$0xff] %v403
        %452 = vst [vmem:[%s163 + $0x160] sm:$0xff] %v404
        %453 = vst [vmem:[%s163 + $0x168] sm:$0xff] %v405
        %454 = vst [vmem:[%s163 + $0x170] sm:$0xff] %v406
        %455 = vst [vmem:[%s163 + $0x178] sm:$0xff] %v407
        %s456 = sand.u32 %s75, 1
        %s457 = scalar_lea.sflag [#allocation5], %s456
        %s458 = sand.u32 %s75, 1
        %s459 = smul.addr %s458, 384
        %s460 = scalar_lea.vmem [#allocation6], %s459
        // Predicated region
        $region33: #{tpu_custom_call.1} parent=27 // pred_check
          %p461 = pneg %p85
        $region34: #{tpu_custom_call.1} parent=27 // pred_check_branch
          %463 = sbr.rel (%p461) target = $region36
        $region35: #{tpu_custom_call.1} parent=27 // pred_region
          %s464 = smul.u32 6, %s20
          %s466 = ssub.s32 6144, 6144
          %467 = vsyncadd %s457, %s466
          %s468 = smul.addr %s464, 8
          %s469 = smul.addr %s468, 128
          %s470 = scalar_lea.hbm %s2, %s469
          %s471 = sshll.u32 %s460, 4
          %s472 = int_to_ptr.vmem [resolvable:$true] %s471
          %477 = dma.vmem_to_hbm [thread:$0]  %s472, 6144, %s470, %s457, 1024, 1024, 64
        $region36: #{tpu_custom_call.1} parent=27 // pred_fallthru
          _
      $region28: #{tpu_custom_call.1} parent=5 // pred_fallthru
        _
      %p478 = scmp.le.s32.totalorder 2, %s15
      // Predicated region
      $region37: #{tpu_custom_call.1} parent=5 // pred_check
        %p479 = pneg %p478
      $region38: #{tpu_custom_call.1} parent=5 // pred_check_branch
        %481 = sbr.rel (%p479) target = $region40
      $region39: #{tpu_custom_call.1} parent=5 // pred_region
        %s482 = ssub.s32 %s15, 2
        // Predicated region
        $region41: #{tpu_custom_call.1} parent=39 // pred_check
          %p483 = pneg %p91
        $region42: #{tpu_custom_call.1} parent=39 // pred_check_branch
          %485 = sbr.rel (%p483) target = $region44
        $region43: #{tpu_custom_call.1} parent=39 // pred_region
          %s486 = sand.u32 %s76, 1
          %s487 = scalar_lea.sflag [#allocation5], %s486
          %s488 = sand.u32 %s76, 1
          %s489 = smul.addr %s488, 384
          %s490 = scalar_lea.vmem [#allocation6], %s489
          %491 = dma.done %s487, 6144
        $region44: #{tpu_custom_call.1} parent=39 // pred_fallthru
          _
      $region40: #{tpu_custom_call.1} parent=5 // pred_fallthru
        _
    $region6: #{tpu_custom_call.1} parent=1 // loop_footer
      %s19 = sadd.s32 1, %s15
    $region7: #{tpu_custom_call.1} parent=1 // loop_footer_branch
      %14 = sbr.rel target = $region3
    $region8: #{tpu_custom_call.1} parent=1 // loop_exit
      _
    %492 = vsyncpa [#allocation4], 1
    %s493 = scalar_lea.sflag [#allocation4], 1
    %494 = vsyncpa %s493, 1
    %495 = vsyncpa [#allocation5], 1
    %s496 = scalar_lea.sflag [#allocation5], 1
    %497 = vsyncpa %s496, 1

</llo_original>
